<compile_context>
chip_gen: v7x
topology: tpu7x:2x2x1
jax: 0.10.0
libtpu: 0.0.40
codegen_flags: <defaults>
</compile_context>

<pallas_src>
import functools

import jax
import jax.numpy as jnp
from jax import lax
from jax.experimental import pallas as pl
from jax.experimental.pallas import tpu as pltpu


def _round_up(n, m):
    return ((n + m - 1) // m) * m


def _ic_kernel_single_k(x_ref, w_ref, b_ref, o_ref):
    # x_ref: [tm, Dp]   w_ref: [tn, Dp]   b_ref: [1, tn]   o_ref: [tm, tn]
    acc = lax.dot_general(
        x_ref[...],
        w_ref[...],
        dimension_numbers=(((1,), (1,)), ((), ())),   # contract on D => x @ w.T
        preferred_element_type=jnp.float32,
    )
    o_ref[...] = (acc + b_ref[...]).astype(o_ref.dtype)


def _ic_kernel_multi_k(x_ref, w_ref, b_ref, o_ref, acc_ref):
    # x_ref: [tm, tk]   (batch tile, feature tile)
    # w_ref: [tn, tk]   (label tile, feature tile)  -- PyTorch [L, D] layout
    # b_ref: [1,  tn]
    # o_ref: [tm, tn]
    # acc_ref: [tm, tn] f32 accumulator (persists across the K grid axis)
    k = pl.program_id(2)

    @pl.when(k == 0)
    def _():
        acc_ref[...] = jnp.zeros_like(acc_ref)

    acc_ref[...] += lax.dot_general(
        x_ref[...],
        w_ref[...],
        dimension_numbers=(((1,), (1,)), ((), ())),   # contract on D => x @ w.T
        preferred_element_type=jnp.float32,
    )

    @pl.when(k == pl.num_programs(2) - 1)
    def _():
        # Bias fused into the epilogue of the final K step only.
        o_ref[...] = (acc_ref[...] + b_ref[...]).astype(o_ref.dtype)


@functools.partial(jax.jit, static_argnames=("tm", "tn", "tk"))
def intent_classifier(x, weight, bias, *, tm=None, tn=None, tk=None):
    """Forward pass of IntentClassifier (dropout(p=0) + Linear).

    x:      [B, D] activations
    weight: [L, D] (PyTorch nn.Linear layout, NOT pre-transposed)
    bias:   [L]
    returns [B, L]
    """
    B, D = x.shape
    L, D2 = weight.shape
    assert D == D2 and bias.shape == (L,)

    # Tile sizes: sublane-aligned batch tile, lane-dense (x128) label tile,
    # 512-deep K tile.
    if tm is None:
        tm = min(256, _round_up(B, 8))
    if tn is None:
        tn = min(256, _round_up(L, 128))
    if tk is None:
        tk = min(512, _round_up(D, 128))

    Bp, Lp, Dp = _round_up(B, tm), _round_up(L, tn), _round_up(D, tk)

    # Zero-pad to tile multiples (exact: padded D columns / L rows add 0).
    xp = x if (Bp, Dp) == (B, D) else jnp.pad(x, ((0, Bp - B), (0, Dp - D)))
    wp = (weight if (Lp, Dp) == (L, D)
          else jnp.pad(weight, ((0, Lp - L), (0, Dp - D))))
    b2 = bias.reshape(1, L)
    if Lp != L:
        b2 = jnp.pad(b2, ((0, 0), (0, Lp - L)))

    cost = pl.CostEstimate(
        flops=2 * B * D * L,
        transcendentals=0,
        bytes_accessed=4 * (B * D + D * L + B * L),
    )

    if Dp == tk:
        # Fast path: whole contraction in one MXU call, no accumulator
        # scratch, no K grid axis, bias fused directly into the store.
        grid = (Bp // tm, Lp // tn)
        out_padded = pl.pallas_call(
            _ic_kernel_single_k,
            out_shape=jax.ShapeDtypeStruct((Bp, Lp), x.dtype),
            grid_spec=pltpu.PrefetchScalarGridSpec(
                num_scalar_prefetch=0,
                grid=grid,
                in_specs=[
                    pl.BlockSpec((tm, Dp), lambda i, j: (i, 0)),   # x
                    pl.BlockSpec((tn, Dp), lambda i, j: (j, 0)),   # weight [L, D]
                    pl.BlockSpec((1, tn), lambda i, j: (0, j)),    # bias
                ],
                out_specs=pl.BlockSpec((tm, tn), lambda i, j: (i, j)),
            ),
            compiler_params=pltpu.CompilerParams(
                dimension_semantics=("parallel", "parallel"),
            ),
            cost_estimate=cost,
        )(xp, wp, b2)
    else:
        # General path: tile the D reduction across the last grid axis.
        grid = (Bp // tm, Lp // tn, Dp // tk)
        out_padded = pl.pallas_call(
            _ic_kernel_multi_k,
            out_shape=jax.ShapeDtypeStruct((Bp, Lp), x.dtype),
            grid_spec=pltpu.PrefetchScalarGridSpec(
                num_scalar_prefetch=0,
                grid=grid,
                in_specs=[
                    pl.BlockSpec((tm, tk), lambda i, j, k: (i, k)),   # x
                    pl.BlockSpec((tn, tk), lambda i, j, k: (j, k)),   # weight
                    pl.BlockSpec((1, tn), lambda i, j, k: (0, j)),    # bias
                ],
                out_specs=pl.BlockSpec((tm, tn), lambda i, j, k: (i, j)),
                scratch_shapes=[pltpu.VMEM((tm, tn), jnp.float32)],
            ),
            compiler_params=pltpu.CompilerParams(
                dimension_semantics=("parallel", "parallel", "arbitrary"),
            ),
            cost_estimate=cost,
        )(xp, wp, b2)

    if (Bp, Lp) == (B, L):
        return out_padded
    return out_padded[:B, :L]


if __name__ == "__main__":
    # Small shapes implied by the module: x = [batch, input_dim].
    batch = 2
    input_dim = 32
    num_intent_labels = 8

    key = jax.random.PRNGKey(0)
    kx, kw, kb = jax.random.split(key, 3)

    x = jax.random.normal(kx, (batch, input_dim), dtype=jnp.float32)
    # PyTorch-Linear-like uniform init bounds (deterministic).
    bound = 1.0 / (input_dim ** 0.5)
    weight = jax.random.uniform(
        kw, (num_intent_labels, input_dim), minval=-bound, maxval=bound,
        dtype=jnp.float32)
    bias = jax.random.uniform(
        kb, (num_intent_labels,), minval=-bound, maxval=bound,
        dtype=jnp.float32)

    out = intent_classifier(x, weight, bias)
    out = jax.block_until_ready(out)

    # Reference in plain JAX (dropout(p=0) is the identity).
    ref = x @ weight.T + bias
    assert out.shape == (batch, num_intent_labels)
    assert jnp.allclose(out, ref, atol=1e-5, rtol=1e-5)

    # Also exercise the multi-K-step accumulator path at a larger D.
    D2, L2, B2 = 640, 200, 16
    k2x, k2w, k2b = jax.random.split(jax.random.PRNGKey(1), 3)
    x2 = jax.random.normal(k2x, (B2, D2), dtype=jnp.float32)
    w2 = jax.random.normal(k2w, (L2, D2), dtype=jnp.float32) * 0.05
    b2 = jax.random.normal(k2b, (L2,), dtype=jnp.float32)
    out2 = jax.block_until_ready(intent_classifier(x2, w2, b2, tk=256))
    ref2 = x2 @ w2.T + b2
    assert out2.shape == (B2, L2)
    assert jnp.allclose(out2, ref2, atol=1e-4, rtol=1e-4)

    print("KERNEL_OK")
</pallas_src>

<mosaic_0001>
module attributes {stable_mosaic.version = 11 : i64} {
  func.func @_ic_kernel_single_k(%arg0: i32, %arg1: i32, %arg2: memref<8x128xf32, #tpu.memory_space<vmem>>, %arg3: memref<128x128xf32, #tpu.memory_space<vmem>>, %arg4: memref<1x128xf32, #tpu.memory_space<vmem>>, %arg5: memref<8x128xf32, #tpu.memory_space<vmem>>) attributes {dimension_semantics = [#tpu.dimension_semantics<parallel>, #tpu.dimension_semantics<parallel>], iteration_bounds = array<i64: 1, 1>, scalar_prefetch = 0 : i64, scratch_operands = 0 : i64, tpu.core_type = #tpu.core_type<tc>, window_params = [{transform_indices = @transform_0, window_bounds = array<i64: 8, 128>}, {transform_indices = @transform_1, window_bounds = array<i64: 128, 128>}, {transform_indices = @transform_2, window_bounds = array<i64: 1, 128>}, {transform_indices = @transform_3, window_bounds = array<i64: 8, 128>}]} {
    %c0 = arith.constant 0 : index
    %c0_0 = arith.constant 0 : index
    %0 = vector.load %arg2[%c0, %c0_0] : memref<8x128xf32, #tpu.memory_space<vmem>>, vector<8x128xf32>
    %c0_1 = arith.constant 0 : index
    %c0_2 = arith.constant 0 : index
    %1 = vector.load %arg3[%c0_1, %c0_2] : memref<128x128xf32, #tpu.memory_space<vmem>>, vector<128x128xf32>
    %cst = arith.constant dense<0.000000e+00> : vector<8x128xf32>
    %2 = tpu.matmul %0, %1, %cst {dimension_numbers = #tpu.dot_dimension_numbers<[1], [1], [0], [0], [0, 0, 1, 0], [], []>} : vector<8x128xf32>, vector<128x128xf32>, vector<8x128xf32> -> vector<8x128xf32>
    %c0_3 = arith.constant 0 : index
    %c0_4 = arith.constant 0 : index
    %3 = vector.load %arg4[%c0_3, %c0_4] : memref<1x128xf32, #tpu.memory_space<vmem>>, vector<1x128xf32>
    %4 = vector.broadcast %3 : vector<1x128xf32> to vector<8x128xf32>
    %5 = arith.addf %2, %4 : vector<8x128xf32>
    %c0_5 = arith.constant 0 : index
    %c0_6 = arith.constant 0 : index
    %6 = vector.load %arg5[%c0_5, %c0_6] : memref<8x128xf32, #tpu.memory_space<vmem>>, vector<8x128xf32>
    tpu.vector_store %arg5[%c0_5, %c0_6], %5 {strides = array<i32>} : memref<8x128xf32, #tpu.memory_space<vmem>>, vector<8x128xf32>,
    return
  }
  func.func @transform_0(%arg0: i32, %arg1: i32) -> (i32, i32) {
    %c0_i32 = arith.constant 0 : i32
    %c0_i32_0 = arith.constant 0 : i32
    return %arg0, %c0_i32 : i32, i32
  }
  func.func @transform_1(%arg0: i32, %arg1: i32) -> (i32, i32) {
    %c0_i32 = arith.constant 0 : i32
    %c0_i32_0 = arith.constant 0 : i32
    return %arg1, %c0_i32 : i32, i32
  }
  func.func @transform_2(%arg0: i32, %arg1: i32) -> (i32, i32) {
    %c0_i32 = arith.constant 0 : i32
    %c0_i32_0 = arith.constant 0 : i32
    return %c0_i32, %arg1 : i32, i32
  }
  func.func @transform_3(%arg0: i32, %arg1: i32) -> (i32, i32) {
    %c0_i32 = arith.constant 0 : i32
    return %arg0, %arg1 : i32, i32
  }
}

</mosaic_0001>

<llo_original>
// kernel: intent_classifier.1
$region0: #{intent_classifier.1}
  #allocation0 [shape = 'u32[]', space=smem, size = 0x4, offset = 0x4, fixed_abs, tag = 'smem constant byte address 0x4 - core index']
  #allocation1 [shape = 'u32[144,128]{1,0:T(1,128)}', space=vmem, size = 0x12000, scoped, tag = 'internal scratch']
  %s0 = inlined_call_operand.vmem [shape: f32[8,128], index: 0, kind: input, shape index: {}]
  %s1 = inlined_call_operand.vmem [shape: f32[128,128], index: 1, kind: input, shape index: {}]
  %s2 = inlined_call_operand.vmem [shape: f32[1,128], index: 2, kind: input, shape index: {}]
  %s3 = inlined_call_operand.vmem [shape: f32[8,128], index: 3, kind: output, shape index: {}]
  %s4 = sld [smem:[#allocation0]]
  $region22: #{intent_classifier.1} parent=0
    _
  %s6 = ssub.s32 1, %s4
  %s7 = scalar_select 0, %s6, %s4
  // Predicated region
  $region2: #{intent_classifier.1} parent=0 // pred_check
    _
  $region3: #{intent_classifier.1} parent=0 // pred_check_branch
    %9 = sbr.rel (0) target = $region5
  $region4: #{intent_classifier.1} parent=0 // pred_region
    _
  $region5: #{intent_classifier.1} parent=0 // pred_fallthru
    _
  // Predicated region
  $region6: #{intent_classifier.1} parent=0 // pred_check
    _
  $region7: #{intent_classifier.1} parent=0 // pred_check_branch
    %11 = sbr.rel (0) target = $region9
  $region8: #{intent_classifier.1} parent=0 // pred_region
    _
  $region9: #{intent_classifier.1} parent=0 // pred_fallthru
    _
  // Predicated region
  $region10: #{intent_classifier.1} parent=0 // pred_check
    _
  $region11: #{intent_classifier.1} parent=0 // pred_check_branch
    %13 = sbr.rel (0) target = $region13
  $region12: #{intent_classifier.1} parent=0 // pred_region
    _
  $region13: #{intent_classifier.1} parent=0 // pred_fallthru
    _
  %v14 = vld [vmem:[%s0] sm:$0xff]
  %v15 = vld [vmem:[%s1] sm:$0xff]
  %v16 = vld [vmem:[%s1 + $0x8] sm:$0xff]
  %v17 = vld [vmem:[%s1 + $0x10] sm:$0xff]
  %v18 = vld [vmem:[%s1 + $0x18] sm:$0xff]
  %v19 = vld [vmem:[%s1 + $0x20] sm:$0xff]
  %v20 = vld [vmem:[%s1 + $0x28] sm:$0xff]
  %v21 = vld [vmem:[%s1 + $0x30] sm:$0xff]
  %v22 = vld [vmem:[%s1 + $0x38] sm:$0xff]
  %v23 = vld [vmem:[%s1 + $0x40] sm:$0xff]
  %v24 = vld [vmem:[%s1 + $0x48] sm:$0xff]
  %v25 = vld [vmem:[%s1 + $0x50] sm:$0xff]
  %v26 = vld [vmem:[%s1 + $0x58] sm:$0xff]
  %v27 = vld [vmem:[%s1 + $0x60] sm:$0xff]
  %v28 = vld [vmem:[%s1 + $0x68] sm:$0xff]
  %v29 = vld [vmem:[%s1 + $0x70] sm:$0xff]
  %v30 = vld [vmem:[%s1 + $0x78] sm:$0xff]
  %v31 = vld [vmem:[%s2] sm:$0x1]
  %v33 = vlaneseq
  %v34 = vshrl.u32 %v33, 7
  %v35 = vsub.s32 0, %v34
  %v36 = vrot.slane %v31, %v35
  %38 = vmatprep.subr.mxu0 0.0
  %39 = vmatpush1.xpose.msra.mxu0 %v15
  %40 = vmatprep.subr.mxu0 0.0
  %41 = vmatpush1.xpose.msra.mxu0 %v16
  %42 = vmatprep.subr.mxu0 0.0
  %43 = vmatpush1.xpose.msra.mxu0 %v17
  %44 = vmatprep.subr.mxu0 0.0
  %45 = vmatpush1.xpose.msra.mxu0 %v18
  %46 = vmatprep.subr.mxu0 0.0
  %47 = vmatpush1.xpose.msra.mxu0 %v19
  %48 = vmatprep.subr.mxu0 0.0
  %49 = vmatpush1.xpose.msra.mxu0 %v20
  %50 = vmatprep.subr.mxu0 0.0
  %51 = vmatpush1.xpose.msra.mxu0 %v21
  %52 = vmatprep.subr.mxu0 0.0
  %53 = vmatpush1.xpose.msra.mxu0 %v22
  %54 = vmatprep.subr.mxu0 0.0
  %55 = vmatpush1.xpose.msra.mxu0 %v23
  %56 = vmatprep.subr.mxu0 0.0
  %57 = vmatpush1.xpose.msra.mxu0 %v24
  %58 = vmatprep.subr.mxu0 0.0
  %59 = vmatpush1.xpose.msra.mxu0 %v25
  %60 = vmatprep.subr.mxu0 0.0
  %61 = vmatpush1.xpose.msra.mxu0 %v26
  %62 = vmatprep.subr.mxu0 0.0
  %63 = vmatpush1.xpose.msra.mxu0 %v27
  %64 = vmatprep.subr.mxu0 0.0
  %65 = vmatpush1.xpose.msra.mxu0 %v28
  %66 = vmatprep.subr.mxu0 0.0
  %67 = vmatpush1.xpose.msra.mxu0 %v29
  %68 = vmatprep.subr.mxu0 0.0
  %69 = vmatpush1.xpose.msra.mxu0 %v30
  %70 = vmatprep.subr.mxu0 0.0
  %71 = vmatpush1.xpose.msra.mxu0 0.0
  %72 = vmatprep.subr.mxu0 0.0
  %73 = vmatpush1.xpose.msra.mxu0 0.0
  %74 = vmatprep.subr.mxu0 0.0
  %75 = vmatpush1.xpose.msra.mxu0 0.0
  %76 = vmatprep.subr.mxu0 0.0
  %77 = vmatpush1.xpose.msra.mxu0 0.0
  %78 = vmatprep.subr.mxu0 0.0
  %79 = vmatpush1.xpose.msra.mxu0 0.0
  %80 = vmatprep.subr.mxu0 0.0
  %81 = vmatpush1.xpose.msra.mxu0 0.0
  %82 = vmatprep.subr.mxu0 0.0
  %83 = vmatpush1.xpose.msra.mxu0 0.0
  %84 = vmatprep.subr.mxu0 0.0
  %85 = vmatpush1.xpose.msra.mxu0 0.0
  %86 = vmatprep.subr.mxu0 0.0
  %87 = vmatpush1.xpose.msra.mxu0 0.0
  %88 = vmatprep.subr.mxu0 0.0
  %89 = vmatpush1.xpose.msra.mxu0 0.0
  %90 = vmatprep.subr.mxu0 0.0
  %91 = vmatpush1.xpose.msra.mxu0 0.0
  %92 = vmatprep.subr.mxu0 0.0
  %93 = vmatpush1.xpose.msra.mxu0 0.0
  %94 = vmatprep.subr.mxu0 0.0
  %95 = vmatpush1.xpose.msra.mxu0 0.0
  %96 = vmatprep.subr.mxu0 0.0
  %97 = vmatpush1.xpose.msra.mxu0 0.0
  %98 = vmatprep.subr.mxu0 0.0
  %99 = vmatpush1.xpose.msra.mxu0 0.0
  %100 = vmatprep.subr.mxu0 0.0
  %101 = vmatpush1.xpose.msra.mxu0 0.0
  %102 = vmatprep.mubr.f32.mxu0 0.0
  %103 = vmatmul.mubr.f32.gmra.mrb[0].mxu0 %v14
  %v104 = vpop.f32.mrb[0].mxu0
  %v105 = vadd.f32 %v36, %v104
  %v106 = vpop.f32.mrb[0].mxu0
  %107 = vdwg.mxu0
  %108 = vst [vmem:[%s3] sm:$0xff] %v105
  // Predicated region
  $region14: #{intent_classifier.1} parent=0 // pred_check
    _
  $region15: #{intent_classifier.1} parent=0 // pred_check_branch
    %110 = sbr.rel (0) target = $region17
  $region16: #{intent_classifier.1} parent=0 // pred_region
    _
  $region17: #{intent_classifier.1} parent=0 // pred_fallthru
    _
  // Predicated region
  $region18: #{intent_classifier.1} parent=0 // pred_check
    _
  $region19: #{intent_classifier.1} parent=0 // pred_check_branch
    %112 = sbr.rel (0) target = $region21
  $region20: #{intent_classifier.1} parent=0 // pred_region
    _
  $region21: #{intent_classifier.1} parent=0 // pred_fallthru
    _

</llo_original>
